<compile_context>
chip_gen: v7x
topology: tpu7x:2x2x1
jax: 0.10.0
libtpu: 0.0.40
codegen_flags: <defaults>
</compile_context>

<pallas_src>
import jax
import jax.numpy as jnp
from jax.experimental import pallas as pl
from jax.experimental.pallas import tpu as pltpu


def _round_up(v, m):
    return (v + m - 1) // m * m


def nand_kernel(x_ref, m_ref, o_ref):
    # x_ref: (tb, X) bf16 batch tile
    # m_ref: (X, 2Y) bf16 stacked one-hot selector masks (resident across batch tiles)
    # o_ref: (tb, Y) f32 NAND output tile
    out = jnp.dot(x_ref[...], m_ref[...],
                  preferred_element_type=jnp.float32)          # (tb, 2Y), single fused GEMM
    y = o_ref.shape[-1]
    out_a = out[:, :y]
    out_b = out[:, y:]
    o_ref[...] = (1.0 - out_a * out_b).astype(o_ref.dtype)


def _stacked_hard_masks(w_a, w_b):
    """Batch-invariant one-hot argmax masks, stacked and pre-transposed to (X, 2Y) bf16."""
    def hard(w):
        idx = jnp.argmax(w, axis=-1)                            # first occurrence, matches torch
        return jax.nn.one_hot(idx, w.shape[-1], dtype=jnp.bfloat16)   # (Y, X), exact {0,1}
    m = jnp.concatenate([hard(w_a), hard(w_b)], axis=0)         # (2Y, X)
    return m.T                                                  # (X, 2Y), one-time transpose outside kernel


def compacted_nand(x, w_a, w_b, *, block_b=256):
    """x: (B, X) binary float; w_a, w_b: (Y, X). Returns (B, Y) float32 NAND output."""
    b, xdim = x.shape
    y = w_a.shape[0]

    m_t = _stacked_hard_masks(w_a, w_b)                         # (X, 2Y) bf16

    # Batch tile: multiple of 8 sublanes, capped (re-derive cap per generation if B grows).
    tb = max(8, min(block_b, _round_up(b, 8)) // 8 * 8)
    pb = _round_up(b, tb)

    x_bf = x.astype(jnp.bfloat16)
    if pb != b:
        x_bf = jnp.pad(x_bf, ((0, pb - b), (0, 0)))

    out = pl.pallas_call(
        nand_kernel,
        out_shape=jax.ShapeDtypeStruct((pb, y), jnp.float32),
        grid=(pb // tb,),
        in_specs=[
            pl.BlockSpec((tb, xdim), lambda i: (i, 0)),         # batch-tiled input
            pl.BlockSpec((xdim, 2 * y), lambda i: (0, 0)),      # masks resident across grid steps
        ],
        out_specs=pl.BlockSpec((tb, y), lambda i: (i, 0)),
        compiler_params=pltpu.CompilerParams(
            dimension_semantics=("parallel",),                  # megacore sharding on v7x
            vmem_limit_bytes=32 << 20,
        ),
    )(x_bf, m_t)
    return out[:b]


def _reference(x, w_a, w_b):
    """Pure-JAX equivalent of the PyTorch forward (inference path)."""
    def sel(w):
        p = jax.nn.softmax(w, axis=-1)
        hard = jax.nn.one_hot(jnp.argmax(w, axis=-1), w.shape[1], dtype=jnp.float32)
        mask = hard - jax.lax.stop_gradient(p) + p              # straight-through (== hard)
        return x @ mask.T
    return 1.0 - sel(w_a) * sel(w_b)


def _xavier_uniform(key, out_f, in_f):
    bound = jnp.sqrt(6.0 / (in_f + out_f))
    return jax.random.uniform(key, (out_f, in_f), jnp.float32, -bound, bound)


if __name__ == "__main__":
    X_DIM, Y_DIM, BATCH = 32, 16, 8

    key = jax.random.PRNGKey(0)
    k_x, k_a, k_b = jax.random.split(key, 3)

    # binary {0,1} input, as required by check_binary_tensor on the selector output
    x = jax.random.bernoulli(k_x, 0.5, (BATCH, X_DIM)).astype(jnp.float32)
    w_a = _xavier_uniform(k_a, Y_DIM, X_DIM)
    w_b = _xavier_uniform(k_b, Y_DIM, X_DIM)

    out = compacted_nand(x, w_a, w_b)
    out = jax.block_until_ready(out)

    ref = _reference(x, w_a, w_b)
    assert out.shape == (BATCH, Y_DIM)
    assert jnp.allclose(out, ref, atol=1e-5), "mismatch vs. JAX reference"
    # check_binary_tensor equivalent (exact, since masks are exact one-hot and x is binary)
    assert bool(jnp.all((out == 0.0) | (out == 1.0))), "nand output is not binary"

    print("KERNEL_OK")
</pallas_src>

<mosaic_0001>
module attributes {stable_mosaic.version = 11 : i64} {
  func.func @nand_kernel(%arg0: i32, %arg1: memref<8x32xbf16, #tpu.memory_space<vmem>>, %arg2: memref<32x32xbf16, #tpu.memory_space<vmem>>, %arg3: memref<8x16xf32, #tpu.memory_space<vmem>>) attributes {dimension_semantics = [#tpu.dimension_semantics<parallel>], iteration_bounds = array<i64: 1>, scalar_prefetch = 0 : i64, scratch_operands = 0 : i64, tpu.core_type = #tpu.core_type<tc>, window_params = [{transform_indices = @transform_0, window_bounds = array<i64: 8, 32>}, {pipeline_mode = #tpu.pipeline_mode<synchronous>, transform_indices = @transform_1, window_bounds = array<i64: 32, 32>}, {transform_indices = @transform_2, window_bounds = array<i64: 8, 16>}]} {
    %c0 = arith.constant 0 : index
    %c0_0 = arith.constant 0 : index
    %0 = vector.load %arg1[%c0, %c0_0] : memref<8x32xbf16, #tpu.memory_space<vmem>>, vector<8x32xbf16>
    %c0_1 = arith.constant 0 : index
    %c0_2 = arith.constant 0 : index
    %1 = vector.load %arg2[%c0_1, %c0_2] : memref<32x32xbf16, #tpu.memory_space<vmem>>, vector<32x32xbf16>
    %cst = arith.constant dense<0.000000e+00> : vector<8x32xf32>
    %2 = tpu.matmul %0, %1, %cst {dimension_numbers = #tpu.dot_dimension_numbers<[1], [0], [0], [1], [0, 0, 1, 1], [], []>} : vector<8x32xbf16>, vector<32x32xbf16>, vector<8x32xf32> -> vector<8x32xf32>
    %3 = vector.extract_strided_slice %2 {offsets = [0, 0], sizes = [8, 16], strides = [1, 1]} : vector<8x32xf32> to vector<8x16xf32>
    %4 = vector.extract_strided_slice %2 {offsets = [0, 16], sizes = [8, 16], strides = [1, 1]} : vector<8x32xf32> to vector<8x16xf32>
    %5 = arith.mulf %3, %4 : vector<8x16xf32>
    %cst_3 = arith.constant 1.000000e+00 : f32
    %6 = vector.broadcast %cst_3 : f32 to vector<8x16xf32>
    %7 = arith.subf %6, %5 : vector<8x16xf32>
    %c0_4 = arith.constant 0 : index
    %c0_5 = arith.constant 0 : index
    %8 = vector.load %arg3[%c0_4, %c0_5] : memref<8x16xf32, #tpu.memory_space<vmem>>, vector<8x16xf32>
    tpu.vector_store %arg3[%c0_4, %c0_5], %7 {strides = array<i32>} : memref<8x16xf32, #tpu.memory_space<vmem>>, vector<8x16xf32>,
    return
  }
  func.func @transform_0(%arg0: i32) -> (i32, i32) {
    %c0_i32 = arith.constant 0 : i32
    %c0_i32_0 = arith.constant 0 : i32
    return %arg0, %c0_i32 : i32, i32
  }
  func.func @transform_1(%arg0: i32) -> (i32, i32) {
    %c0_i32 = arith.constant 0 : i32
    %c0_i32_0 = arith.constant 0 : i32
    %c0_i32_1 = arith.constant 0 : i32
    return %c0_i32, %c0_i32_0 : i32, i32
  }
  func.func @transform_2(%arg0: i32) -> (i32, i32) {
    %c0_i32 = arith.constant 0 : i32
    %c0_i32_0 = arith.constant 0 : i32
    return %arg0, %c0_i32 : i32, i32
  }
}

</mosaic_0001>

<llo_original>
// kernel: tpu_custom_call.1
$region0: #{tpu_custom_call.1}
  #allocation0 [shape = 'u32[]', space=smem, size = 0x4, offset = 0x4, fixed_abs, tag = 'smem constant byte address 0x4 - core index']
  #allocation1 [shape = 'u32[144,128]{1,0:T(1,128)}', space=vmem, size = 0x12000, scoped, tag = 'internal scratch']
  %s0 = inlined_call_operand.hbm [shape: bf16[8,32], index: 0, kind: input, shape index: {}]
  %s1 = inlined_call_operand.hbm [shape: bf16[32,32], index: 1, kind: input, shape index: {}]
  %s2 = inlined_call_operand.hbm [shape: f32[8,16], index: 2, kind: output, shape index: {}]
  %s3 = sld [smem:[#allocation0]]
  $region26: #{tpu_custom_call.1} parent=0
    _
  %s5 = ssub.s32 1, %s3
  %s6 = scalar_select 0, %s5, %s3
  $region1: #{tpu_custom_call.1} parent=0
    #allocation2 [shape = 'u8[2048]{0}', space=vmem, size = 0x800, scoped, tag = 'input window, operand 0, single buffered']
    #allocation3 [shape = 's32[1]{0}', space=sflag, size = 0x4, scoped, tag = 'scoped memory for tpu_custom_call.1']
    #allocation4 [shape = 's32[1]{0}', space=sflag, size = 0x4, scoped, tag = 'scoped memory for tpu_custom_call.1']
    #allocation5 [shape = 'u8[8192]{0}', space=vmem, size = 0x2000, scoped, tag = 'input window, operand 1, single buffered']
    #allocation6 [shape = 's32[1]{0}', space=sflag, size = 0x4, scoped, tag = 'scoped memory for tpu_custom_call.1']
    #allocation7 [shape = 'u8[4096]{0}', space=vmem, size = 0x1000, scoped, tag = 'output window, operand 0, single buffered']
    %7 = vsyncpa [#allocation3], 0
    %8 = vsyncpa [#allocation6], 0
    %9 = vsyncpa [#allocation4], 0
    // Predicated region
    $region2: #{tpu_custom_call.1} parent=1 // pred_check
      _
    $region3: #{tpu_custom_call.1} parent=1 // pred_check_branch
      %11 = sbr.rel (0) target = $region5
    $region4: #{tpu_custom_call.1} parent=1 // pred_region
      %s13 = ssub.s32 64, 64
      %14 = vsyncadd [#allocation3], %s13
      %s16 = sshll.u32 [#allocation2], 4
      %s17 = int_to_ptr.vmem [resolvable:$true] %s16
      %19 = dma.hbm_to_vmem [thread:$0]  %s0, 64, %s17, [#allocation3]
    $region5: #{tpu_custom_call.1} parent=1 // pred_fallthru
      _
    // Predicated region
    $region6: #{tpu_custom_call.1} parent=1 // pred_check
      _
    $region7: #{tpu_custom_call.1} parent=1 // pred_check_branch
      %21 = sbr.rel (0) target = $region9
    $region8: #{tpu_custom_call.1} parent=1 // pred_region
      %s23 = ssub.s32 256, 256
      %24 = vsyncadd [#allocation6], %s23
      %s25 = sshll.u32 [#allocation5], 4
      %s26 = int_to_ptr.vmem [resolvable:$true] %s25
      %31 = dma.hbm_to_vmem [thread:$0]  %s1, 256, %s26, [#allocation6], 64, 64, 4
    $region9: #{tpu_custom_call.1} parent=1 // pred_fallthru
      _
    // Predicated region
    $region10: #{tpu_custom_call.1} parent=1 // pred_check
      _
    $region11: #{tpu_custom_call.1} parent=1 // pred_check_branch
      %33 = sbr.rel (0) target = $region13
    $region12: #{tpu_custom_call.1} parent=1 // pred_region
      %34 = dma.done [#allocation3], 64
    $region13: #{tpu_custom_call.1} parent=1 // pred_fallthru
      _
    // Predicated region
    $region14: #{tpu_custom_call.1} parent=1 // pred_check
      _
    $region15: #{tpu_custom_call.1} parent=1 // pred_check_branch
      %36 = sbr.rel (0) target = $region17
    $region16: #{tpu_custom_call.1} parent=1 // pred_region
      %37 = dma.done [#allocation6], 256
    $region17: #{tpu_custom_call.1} parent=1 // pred_fallthru
      _
    %v39 = vld [vmem:[#allocation2] sm:$0xf]
    %v40 = vld [vmem:[#allocation5] sm:$0xf]
    %v41 = vld [vmem:[#allocation5 + $0x4] sm:$0xf]
    %v42 = vld [vmem:[#allocation5 + $0x8] sm:$0xf]
    %v43 = vld [vmem:[#allocation5 + $0xc] sm:$0xf]
    %v48 = vunpack.c.l.b16 %v40
    %v49 = vunpack.c.l.b16 %v41
    %v50 = vunpack.c.l.b16 %v42
    %v51 = vunpack.c.l.b16 %v43
    %v52 = vpack.c.b16 %v49, %v48
    %v53 = vpack.c.b16 %v51, %v50
    %vm56 = vcmask 261120
    %v58 = vsel %vm56, %v39, 0
    %60 = vmatprep.subr.bf16.mxu0 0
    %61 = vmatpush1.bf16.msra.mxu0 %v52
    %62 = vmatprep.subr.bf16.mxu0 0
    %63 = vmatpush1.bf16.msra.mxu0 %v53
    %64 = vmatprep.subr.bf16.mxu0 0
    %65 = vmatpush1.bf16.msra.mxu0 0
    %66 = vmatprep.subr.bf16.mxu0 0
    %67 = vmatpush1.bf16.msra.mxu0 0
    %68 = vmatprep.subr.bf16.mxu0 0
    %69 = vmatpush1.bf16.msra.mxu0 0
    %70 = vmatprep.subr.bf16.mxu0 0
    %71 = vmatpush1.bf16.msra.mxu0 0
    %72 = vmatprep.subr.bf16.mxu0 0
    %73 = vmatpush1.bf16.msra.mxu0 0
    %74 = vmatprep.subr.bf16.mxu0 0
    %75 = vmatpush1.bf16.msra.mxu0 0
    %76 = vmatprep.subr.bf16.mxu0 0
    %77 = vmatpush1.bf16.msra.mxu0 0
    %78 = vmatprep.subr.bf16.mxu0 0
    %79 = vmatpush1.bf16.msra.mxu0 0
    %80 = vmatprep.subr.bf16.mxu0 0
    %81 = vmatpush1.bf16.msra.mxu0 0
    %82 = vmatprep.subr.bf16.mxu0 0
    %83 = vmatpush1.bf16.msra.mxu0 0
    %84 = vmatprep.subr.bf16.mxu0 0
    %85 = vmatpush1.bf16.msra.mxu0 0
    %86 = vmatprep.subr.bf16.mxu0 0
    %87 = vmatpush1.bf16.msra.mxu0 0
    %88 = vmatprep.subr.bf16.mxu0 0
    %89 = vmatpush1.bf16.msra.mxu0 0
    %90 = vmatprep.subr.bf16.mxu0 0
    %91 = vmatpush1.bf16.msra.mxu0 0
    %92 = vmatprep.mubr.bf16.mxu0 0
    %93 = vmatmul.mubr.bf16.gmra.mrb[0].mxu0 %v58
    %v94 = vpop.f32.mrb[0].mxu0
    %v95 = vadd.f32 0.0, %v94
    %v96 = vpop.f32.mrb[0].mxu0
    %v97 = vpop.f32.mrb[0].mxu0
    %v98 = vpop.f32.mrb[0].mxu0
    %99 = vdwg.mxu0
    %101 = vrot.lane.b32.xlu0 %v95, 112
    %v102 = vpop.permute.xlu0 %101
    %v104 = vmul.f32 %v95, %v102
    %v105 = vsub.f32 1.0, %v104
    %vm106 = vcmask 130048
    %107 = vst.msk [vmem:[#allocation7] sm:$0xff] %vm106, %v105
    // Predicated region
    $region18: #{tpu_custom_call.1} parent=1 // pred_check
      _
    $region19: #{tpu_custom_call.1} parent=1 // pred_check_branch
      %109 = sbr.rel (0) target = $region21
    $region20: #{tpu_custom_call.1} parent=1 // pred_region
      %s111 = ssub.s32 128, 128
      %112 = vsyncadd [#allocation4], %s111
      %s114 = sshll.u32 [#allocation7], 4
      %s115 = int_to_ptr.vmem [resolvable:$true] %s114
      %117 = dma.vmem_to_hbm [thread:$0]  %s115, 128, %s2, [#allocation4]
    $region21: #{tpu_custom_call.1} parent=1 // pred_fallthru
      _
    // Predicated region
    $region22: #{tpu_custom_call.1} parent=1 // pred_check
      _
    $region23: #{tpu_custom_call.1} parent=1 // pred_check_branch
      %119 = sbr.rel (0) target = $region25
    $region24: #{tpu_custom_call.1} parent=1 // pred_region
      %120 = dma.done [#allocation4], 128
    $region25: #{tpu_custom_call.1} parent=1 // pred_fallthru
      _
    %121 = vsyncpa [#allocation3], 1
    %122 = vsyncpa [#allocation6], 1
    %123 = vsyncpa [#allocation4], 1

</llo_original>
